<compile_context>
chip_gen: v5e
topology: v5e:2x2
jax: 0.10.0
libtpu: 0.0.40
codegen_flags: <defaults>
</compile_context>

<pallas_src>
import functools

import jax
import jax.numpy as jnp
from jax.experimental import pallas as pl
from jax.experimental.pallas import tpu as pltpu

LANES = 128
SUBLANES = 8
TARGET_BLOCK_ROWS = 2048   # (2048,128) f32 = 1 MiB per block


def _round_up(x, m):
    return ((x + m - 1) // m) * m


def _elementwise_loss(d, w_mse, w_l1):
    """Weighted per-element loss in f32; zero-weight terms dropped at trace time."""
    if w_mse != 0.0 and w_l1 != 0.0:
        a = jnp.abs(d)
        return a * (w_mse * a + w_l1)          # == w_mse*d^2 + w_l1*|d|
    if w_mse != 0.0:
        return (w_mse * d) * d
    return w_l1 * jnp.abs(d)


def _num_tensorcores():
    """2 TensorCores per chip on v4/v5p/v7x, 1 on v5e/v6e."""
    try:
        kind = jax.devices()[0].device_kind.lower()
    except Exception:  # pragma: no cover - e.g. interpret mode with no devices
        return 1
    return 2 if any(tag in kind for tag in ("v4", "v5p", "v7")) else 1


def _basic_loss_kernel(pred_ref, targ_ref, out_ref, acc_ref, *,
                       w_mse, w_l1, inv_n, blocks_per_partial,
                       last_block, valid_rows_last, needs_row_mask):
    p_idx = pl.program_id(0)   # partial (TensorCore) index
    i = pl.program_id(1)       # reduction step inside this partial

    @pl.when(i == 0)
    def _init():
        acc_ref[...] = jnp.zeros_like(acc_ref)

    d = pred_ref[...].astype(jnp.float32) - targ_ref[...].astype(jnp.float32)
    term = _elementwise_loss(d, w_mse, w_l1)

    def _accumulate(t):
        # Sublane-group reduction into the small (8,128) accumulator.  The
        # reshape only splits the sublane-major axis, so it is layout-free.
        acc_ref[...] += jnp.sum(t.reshape(t.shape[0] // SUBLANES, SUBLANES, t.shape[1]),
                                axis=0)

    if needs_row_mask:
        # Only the single globally-last block can contain out-of-bounds rows
        # (the BlockSpec DMA is clipped; those rows hold garbage).  Gate the
        # mask with pl.when so every other block keeps the minimal VALU path.
        is_last = (p_idx * blocks_per_partial + i) == last_block

        @pl.when(is_last)
        def _masked():
            row = jax.lax.broadcasted_iota(jnp.int32, term.shape, 0)
            _accumulate(jnp.where(row < valid_rows_last, term, 0.0))

        @pl.when(jnp.logical_not(is_last))
        def _unmasked():
            _accumulate(term)
    else:
        _accumulate(term)

    @pl.when(i == pl.num_programs(1) - 1)
    def _finalize():
        # Each partial writes its weighted-mean contribution as a lane-dense
        # (1,8,128) tile; the wrapper sums it (cross-lane reduce done by XLA).
        out_ref[...] = (acc_ref[...] * inv_n)[None]


def basic_loss(pred, target, losses_and_weights=(("mse", 1.0), ("l1", 0.5))):
    """Weighted sum of mean losses over pred/target (any shape, same shape)."""
    assert pred.shape == target.shape
    n = int(pred.size)
    weights = dict(losses_and_weights)
    # TODO(synk): only the mse/l1 instantiation is supported; arbitrary
    # user-supplied loss callables from the generic PyTorch dict are not.
    w_mse = float(weights.get("mse", 0.0))
    w_l1 = float(weights.get("l1", 0.0))
    if n == 0 or (w_mse == 0.0 and w_l1 == 0.0):
        return jnp.float32(0.0)
    inv_n = 1.0 / float(n)

    p = pred.reshape(-1)
    t = target.reshape(-1)

    rows_full = n // LANES
    kernel_elems = rows_full * LANES

    tail = None
    if kernel_elems < n:
        # TODO(synk): the <128-element lane tail is reduced in plain XLA; for
        # non-lane-aligned n the prefix slice below may still materialize one
        # copy per input (the common lane-aligned case is fully copy-free).
        d_tail = (p[kernel_elems:].astype(jnp.float32)
                  - t[kernel_elems:].astype(jnp.float32))
        tail = jnp.sum(_elementwise_loss(d_tail, w_mse, w_l1)) * inv_n

    if rows_full == 0:
        return tail

    if kernel_elems < n:
        p = p[:kernel_elems]
        t = t[:kernel_elems]
    p2 = p.reshape(rows_full, LANES)
    t2 = t.reshape(rows_full, LANES)

    # Block tiling: block_rows is always a multiple of 8 so the in-kernel
    # sublane-group reshape is valid; the last block may extend past rows_full
    # (clipped DMA + gated in-kernel mask), so no padding copy is ever made.
    block_rows = min(TARGET_BLOCK_ROWS, _round_up(rows_full, SUBLANES))
    total_blocks = pl.cdiv(rows_full, block_rows)
    needs_row_mask = total_blocks * block_rows != rows_full
    valid_rows_last = rows_full - (total_blocks - 1) * block_rows

    # Multi-TensorCore split only where it helps and never with duplicated
    # (clamped) block reads: 2 partials only on 2-TC chips with an even split.
    num_partials = 2 if (_num_tensorcores() >= 2
                         and total_blocks >= 2
                         and total_blocks % 2 == 0) else 1
    blocks_per_partial = total_blocks // num_partials

    def in_index_map(p_idx, i):
        return (p_idx * blocks_per_partial + i, 0)

    def _input_spec():
        # Triple-buffer the inputs when there are enough reduction steps to
        # hide the per-step descriptor/sync overhead.  VMEM use stays ~6 MiB.
        if blocks_per_partial >= 3 and hasattr(pl, "Buffered"):
            try:
                return pl.BlockSpec((block_rows, LANES), in_index_map,
                                    pipeline_mode=pl.Buffered(3))
            except TypeError:
                pass
        return pl.BlockSpec((block_rows, LANES), in_index_map)

    arbitrary = getattr(pltpu, "ARBITRARY", "arbitrary")
    if num_partials == 2:
        sem0 = getattr(pltpu, "CORE_PARALLEL", getattr(pltpu, "PARALLEL", "parallel"))
    else:
        sem0 = arbitrary

    kernel = functools.partial(
        _basic_loss_kernel, w_mse=w_mse, w_l1=w_l1, inv_n=inv_n,
        blocks_per_partial=blocks_per_partial, last_block=total_blocks - 1,
        valid_rows_last=valid_rows_last, needs_row_mask=needs_row_mask)

    in_bytes = kernel_elems * (jnp.dtype(pred.dtype).itemsize
                               + jnp.dtype(target.dtype).itemsize)
    partials = pl.pallas_call(
        kernel,
        out_shape=jax.ShapeDtypeStruct((num_partials, SUBLANES, LANES), jnp.float32),
        grid_spec=pltpu.PrefetchScalarGridSpec(
            num_scalar_prefetch=0,
            grid=(num_partials, blocks_per_partial),
            in_specs=[_input_spec(), _input_spec()],
            out_specs=pl.BlockSpec((1, SUBLANES, LANES),
                                   lambda p_idx, i: (p_idx, 0, 0)),
            scratch_shapes=[pltpu.VMEM((SUBLANES, LANES), jnp.float32)],
        ),
        compiler_params=pltpu.CompilerParams(
            dimension_semantics=(sem0, arbitrary)),
        cost_estimate=pl.CostEstimate(
            flops=6 * kernel_elems, transcendentals=0,
            bytes_accessed=in_bytes + num_partials * SUBLANES * LANES * 4),
    )(p2, t2)

    loss = jnp.sum(partials)
    if tail is not None:
        loss = loss + tail
    return loss


if __name__ == "__main__":
    key = jax.random.PRNGKey(0)
    k1, k2 = jax.random.split(key)

    def ref_loss(pred, target):
        pred = pred.astype(jnp.float32)
        target = target.astype(jnp.float32)
        return (1.0 * jnp.mean((pred - target) ** 2)
                + 0.5 * jnp.mean(jnp.abs(pred - target)))

    # 1) NCHW image-reconstruction shape, lane- and sublane-aligned fast path.
    pred = jax.random.normal(k1, (2, 4, 16, 16), dtype=jnp.float32)
    target = jax.random.normal(k2, (2, 4, 16, 16), dtype=jnp.float32)
    loss = jax.block_until_ready(basic_loss(pred, target))
    ref = ref_loss(pred, target)
    assert jnp.allclose(loss, ref, rtol=1e-5, atol=1e-5), (loss, ref)

    # 2) bf16 inputs, rows not a multiple of 8 (gated row-mask path).
    pred_b = jax.random.normal(k1, (2, 3, 16, 16), dtype=jnp.bfloat16)
    target_b = jax.random.normal(k2, (2, 3, 16, 16), dtype=jnp.bfloat16)
    loss_b = jax.block_until_ready(basic_loss(pred_b, target_b))
    ref_b = ref_loss(pred_b, target_b)
    assert jnp.allclose(loss_b, ref_b, rtol=1e-3, atol=1e-3), (loss_b, ref_b)

    # 3) Non-lane-aligned element count (XLA-handled <128-element tail).
    pred_c = jax.random.normal(k1, (2, 3, 15, 15), dtype=jnp.float32)
    target_c = jax.random.normal(k2, (2, 3, 15, 15), dtype=jnp.float32)
    loss_c = jax.block_until_ready(basic_loss(pred_c, target_c))
    ref_c = ref_loss(pred_c, target_c)
    assert jnp.allclose(loss_c, ref_c, rtol=1e-5, atol=1e-5), (loss_c, ref_c)

    print("KERNEL_OK")
</pallas_src>

<mosaic_0001>
module attributes {stable_mosaic.version = 11 : i64} {
  func.func @_basic_loss_kernel(%arg0: i32, %arg1: i32, %arg2: memref<16x128xf32, #tpu.memory_space<vmem>>, %arg3: memref<16x128xf32, #tpu.memory_space<vmem>>, %arg4: memref<1x8x128xf32, #tpu.memory_space<vmem>>, %arg5: memref<8x128xf32, #tpu.memory_space<vmem>>) attributes {dimension_semantics = [#tpu.dimension_semantics<arbitrary>, #tpu.dimension_semantics<arbitrary>], iteration_bounds = array<i64: 1, 1>, scalar_prefetch = 0 : i64, scratch_operands = 1 : i64, tpu.core_type = #tpu.core_type<tc>, window_params = [{transform_indices = @transform_0, window_bounds = array<i64: 16, 128>}, {transform_indices = @transform_1, window_bounds = array<i64: 16, 128>}, {transform_indices = @transform_2, window_bounds = array<i64: 1, 8, 128>}]} {
    %c0_i32 = arith.constant 0 : i32
    %0 = arith.cmpi eq, %arg1, %c0_i32 : i32
    %1 = arith.extui %0 : i1 to i32
    %c0_i32_0 = arith.constant 0 : i32
    %2 = arith.cmpi ne, %1, %c0_i32_0 : i32
    scf.if %2 {
      %cst_12 = arith.constant 0.000000e+00 : f32
      %20 = vector.broadcast %cst_12 : f32 to vector<8x128xf32>
      %c0_13 = arith.constant 0 : index
      %c0_14 = arith.constant 0 : index
      %21 = vector.load %arg5[%c0_13, %c0_14] : memref<8x128xf32, #tpu.memory_space<vmem>>, vector<8x128xf32>
      tpu.vector_store %arg5[%c0_13, %c0_14], %20 {strides = array<i32>} : memref<8x128xf32, #tpu.memory_space<vmem>>, vector<8x128xf32>,
    } else {
    }
    %c0 = arith.constant 0 : index
    %c0_1 = arith.constant 0 : index
    %3 = vector.load %arg2[%c0, %c0_1] : memref<16x128xf32, #tpu.memory_space<vmem>>, vector<16x128xf32>
    %c0_2 = arith.constant 0 : index
    %c0_3 = arith.constant 0 : index
    %4 = vector.load %arg3[%c0_2, %c0_3] : memref<16x128xf32, #tpu.memory_space<vmem>>, vector<16x128xf32>
    %5 = arith.subf %3, %4 : vector<16x128xf32>
    %6 = math.absf %5 : vector<16x128xf32>
    %cst = arith.constant 1.000000e+00 : f32
    %7 = vector.broadcast %cst : f32 to vector<16x128xf32>
    %8 = arith.mulf %7, %6 : vector<16x128xf32>
    %cst_4 = arith.constant 5.000000e-01 : f32
    %9 = vector.broadcast %cst_4 : f32 to vector<16x128xf32>
    %10 = arith.addf %8, %9 : vector<16x128xf32>
    %11 = arith.mulf %6, %10 : vector<16x128xf32>
    %c0_5 = arith.constant 0 : index
    %c0_6 = arith.constant 0 : index
    %12 = vector.load %arg5[%c0_5, %c0_6] : memref<8x128xf32, #tpu.memory_space<vmem>>, vector<8x128xf32>
    %13 = vector.shape_cast %11 : vector<16x128xf32> to vector<2x8x128xf32>
    %cst_7 = arith.constant dense<0.000000e+00> : vector<8x128xf32>
    %14 = vector.multi_reduction <add>, %13, %cst_7 [0] : vector<2x8x128xf32> to vector<8x128xf32>
    %15 = arith.addf %12, %14 : vector<8x128xf32>
    %c0_8 = arith.constant 0 : index
    %c0_9 = arith.constant 0 : index
    %16 = vector.load %arg5[%c0_8, %c0_9] : memref<8x128xf32, #tpu.memory_space<vmem>>, vector<8x128xf32>
    tpu.vector_store %arg5[%c0_8, %c0_9], %15 {strides = array<i32>} : memref<8x128xf32, #tpu.memory_space<vmem>>, vector<8x128xf32>,
    %c0_i32_10 = arith.constant 0 : i32
    %17 = arith.cmpi eq, %arg1, %c0_i32_10 : i32
    %18 = arith.extui %17 : i1 to i32
    %c0_i32_11 = arith.constant 0 : i32
    %19 = arith.cmpi ne, %18, %c0_i32_11 : i32
    scf.if %19 {
      %c0_12 = arith.constant 0 : index
      %c0_13 = arith.constant 0 : index
      %20 = vector.load %arg5[%c0_12, %c0_13] : memref<8x128xf32, #tpu.memory_space<vmem>>, vector<8x128xf32>
      %cst_14 = arith.constant 4.8828125E-4 : f32
      %21 = vector.broadcast %cst_14 : f32 to vector<8x128xf32>
      %22 = arith.mulf %20, %21 : vector<8x128xf32>
      %23 = vector.shape_cast %22 : vector<8x128xf32> to vector<1x8x128xf32>
      %c0_15 = arith.constant 0 : index
      %c0_16 = arith.constant 0 : index
      %c0_17 = arith.constant 0 : index
      %24 = vector.load %arg4[%c0_15, %c0_16, %c0_17] : memref<1x8x128xf32, #tpu.memory_space<vmem>>, vector<1x8x128xf32>
      tpu.vector_store %arg4[%c0_15, %c0_16, %c0_17], %23 {strides = array<i32>} : memref<1x8x128xf32, #tpu.memory_space<vmem>>, vector<1x8x128xf32>,
    } else {
    }
    return
  }
  func.func @transform_0(%arg0: i32, %arg1: i32) -> (i32, i32) {
    %c1_i32 = arith.constant 1 : i32
    %0 = arith.muli %arg0, %c1_i32 : i32
    %1 = arith.addi %0, %arg1 : i32
    %c0_i32 = arith.constant 0 : i32
    %c0_i32_0 = arith.constant 0 : i32
    return %1, %c0_i32 : i32, i32
  }
  func.func @transform_1(%arg0: i32, %arg1: i32) -> (i32, i32) {
    %c1_i32 = arith.constant 1 : i32
    %0 = arith.muli %arg0, %c1_i32 : i32
    %1 = arith.addi %0, %arg1 : i32
    %c0_i32 = arith.constant 0 : i32
    %c0_i32_0 = arith.constant 0 : i32
    return %1, %c0_i32 : i32, i32
  }
  func.func @transform_2(%arg0: i32, %arg1: i32) -> (i32, i32, i32) {
    %c0_i32 = arith.constant 0 : i32
    %c0_i32_0 = arith.constant 0 : i32
    %c0_i32_1 = arith.constant 0 : i32
    return %arg0, %c0_i32, %c0_i32_0 : i32, i32, i32
  }
}

</mosaic_0001>

<llo_original>
// kernel: tpu_custom_call.1
$region0: #{tpu_custom_call.1}
  #allocation0 [shape = 'u32[]', space=smem, size = 0x4, offset = 0x4, fixed_abs, tag = 'smem constant byte address 0x4 - core index']
  #allocation1 [shape = 'u32[72,128]{1,0:T(1,128)}', space=vmem, size = 0x9000, scoped, tag = 'internal scratch']
  #allocation2 [shape = 'f32[8,128]{1,0:T(8,128)}', space=vmem, size = 0x1000, scoped, tag = 'scratch operand']
  %s0 = inlined_call_operand.hbm [shape: f32[16,128], index: 0, kind: input, shape index: {}]
  %s1 = inlined_call_operand.hbm [shape: f32[16,128], index: 1, kind: input, shape index: {}]
  %s2 = inlined_call_operand.hbm [shape: f32[1,8,128], index: 2, kind: output, shape index: {}]
  %s3 = sld [smem:[#allocation0]]
  $region34: #{tpu_custom_call.1} parent=0
    _
  %s5 = ssub.s32 1, %s3
  %s6 = scalar_select 0, %s5, %s3
  $region1: #{tpu_custom_call.1} parent=0
    #allocation3 [shape = 'u8[8192]{0}', space=vmem, size = 0x2000, scoped, tag = 'input window, operand 0, single buffered']
    #allocation4 [shape = 's32[1]{0}', space=sflag, size = 0x4, scoped, tag = 'scoped memory for tpu_custom_call.1']
    #allocation5 [shape = 's32[1]{0}', space=sflag, size = 0x4, scoped, tag = 'scoped memory for tpu_custom_call.1']
    #allocation6 [shape = 'u8[8192]{0}', space=vmem, size = 0x2000, scoped, tag = 'input window, operand 1, single buffered']
    #allocation7 [shape = 's32[1]{0}', space=sflag, size = 0x4, scoped, tag = 'scoped memory for tpu_custom_call.1']
    #allocation8 [shape = 'u8[4096]{0}', space=vmem, size = 0x1000, scoped, tag = 'output window, operand 0, single buffered']
    %7 = vsyncpa [#allocation4], 0
    %8 = vsyncpa [#allocation7], 0
    %9 = vsyncpa [#allocation5], 0
    // Predicated region
    $region2: #{tpu_custom_call.1} parent=1 // pred_check
      _
    $region3: #{tpu_custom_call.1} parent=1 // pred_check_branch
      %11 = sbr.rel (0) target = $region5
    $region4: #{tpu_custom_call.1} parent=1 // pred_region
      %s12 = sadd.s32 0, 0
      %s13 = smul.u32 2, %s12
      %15 = vsyncadd [#allocation4], 0
      %s16 = smul.addr %s13, 8
      %s17 = scalar_lea.hbm %s0, %s16
      %s18 = sshll.u32 %s17, 4
      %s19 = int_to_ptr.hbm [resolvable:$true] %s18
      %s20 = sshll.u32 [#allocation3], 4
      %s21 = int_to_ptr.vmem [resolvable:$true] %s20
      %26 = dma.hbm_to_vmem [thread:$0]  %s19, 256, %s21, [#allocation4], 128, 128, 8
    $region5: #{tpu_custom_call.1} parent=1 // pred_fallthru
      _
    // Predicated region
    $region6: #{tpu_custom_call.1} parent=1 // pred_check
      _
    $region7: #{tpu_custom_call.1} parent=1 // pred_check_branch
      %28 = sbr.rel (0) target = $region9
    $region8: #{tpu_custom_call.1} parent=1 // pred_region
      %s29 = sadd.s32 0, 0
      %s30 = smul.u32 2, %s29
      %32 = vsyncadd [#allocation7], 0
      %s33 = smul.addr %s30, 8
      %s34 = scalar_lea.hbm %s1, %s33
      %s35 = sshll.u32 %s34, 4
      %s36 = int_to_ptr.hbm [resolvable:$true] %s35
      %s37 = sshll.u32 [#allocation6], 4
      %s38 = int_to_ptr.vmem [resolvable:$true] %s37
      %43 = dma.hbm_to_vmem [thread:$0]  %s36, 256, %s38, [#allocation7], 128, 128, 8
    $region9: #{tpu_custom_call.1} parent=1 // pred_fallthru
      _
    // Predicated region
    $region10: #{tpu_custom_call.1} parent=1 // pred_check
      _
    $region11: #{tpu_custom_call.1} parent=1 // pred_check_branch
      %45 = sbr.rel (0) target = $region13
    $region12: #{tpu_custom_call.1} parent=1 // pred_region
      %47 = dma.done [#allocation4], 256
    $region13: #{tpu_custom_call.1} parent=1 // pred_fallthru
      _
    // Predicated region
    $region14: #{tpu_custom_call.1} parent=1 // pred_check
      _
    $region15: #{tpu_custom_call.1} parent=1 // pred_check_branch
      %49 = sbr.rel (0) target = $region17
    $region16: #{tpu_custom_call.1} parent=1 // pred_region
      %51 = dma.done [#allocation7], 256
    $region17: #{tpu_custom_call.1} parent=1 // pred_fallthru
      _
    %s52 = sadd.s32 0, 0
    %s53 = smul.u32 2, %s52
    %s54 = sadd.s32 0, 0
    %s55 = smul.u32 2, %s54
    %p56 = scmp.eq.s32.totalorder 0, 0
    // Predicated region
    $region18: #{tpu_custom_call.1} parent=1 // pred_check
      %p57 = pneg %p56
    $region19: #{tpu_custom_call.1} parent=1 // pred_check_branch
      %59 = sbr.rel (%p57) target = $region21
    $region20: #{tpu_custom_call.1} parent=1 // pred_region
      %60 = vst [vmem:[#allocation2] sm:$0xff] 0.0
    $region21: #{tpu_custom_call.1} parent=1 // pred_fallthru
      _
    %v61 = vld [vmem:[#allocation3] sm:$0xff]
    %v62 = vld [vmem:[#allocation3 + $0x8] sm:$0xff]
    %v63 = vld [vmem:[#allocation6] sm:$0xff]
    %v64 = vld [vmem:[#allocation6 + $0x8] sm:$0xff]
    %v65 = vsub.f32 %v61, %v63
    %v66 = vsub.f32 %v62, %v64
    %v67 = vand.u32 2147483647, %v65
    %v68 = vand.u32 2147483647, %v66
    %v69 = vadd.f32 %v67, 0.5
    %v70 = vadd.f32 %v68, 0.5
    %v71 = vmul.f32 %v67, %v69
    %v72 = vmul.f32 %v68, %v70
    %v73 = vld [vmem:[#allocation2] sm:$0xff]
    %v74 = vadd.f32 %v71, %v72
    %v75 = vadd.f32 %v73, %v74
    %76 = vst [vmem:[#allocation2] sm:$0xff] %v75
    // Predicated region
    $region22: #{tpu_custom_call.1} parent=1 // pred_check
      %p77 = pneg %p56
    $region23: #{tpu_custom_call.1} parent=1 // pred_check_branch
      %79 = sbr.rel (%p77) target = $region25
    $region24: #{tpu_custom_call.1} parent=1 // pred_region
      %v80 = vld [vmem:[#allocation2] sm:$0xff]
      %v81 = vmul.f32 %v80, 0.00048828125
      %82 = vst [vmem:[#allocation8] sm:$0xff] %v81
    $region25: #{tpu_custom_call.1} parent=1 // pred_fallthru
      _
    // Predicated region
    $region26: #{tpu_custom_call.1} parent=1 // pred_check
      _
    $region27: #{tpu_custom_call.1} parent=1 // pred_check_branch
      %84 = sbr.rel (0) target = $region29
    $region28: #{tpu_custom_call.1} parent=1 // pred_region
      %86 = vsyncadd [#allocation5], 0
      %s88 = sshll.u32 [#allocation8], 4
      %s89 = int_to_ptr.vmem [resolvable:$true] %s88
      %s90 = sshll.u32 %s2, 4
      %s91 = int_to_ptr.hbm [resolvable:$true] %s90
      %93 = dma.vmem_to_hbm [thread:$0]  %s89, 128, %s91, [#allocation5]
    $region29: #{tpu_custom_call.1} parent=1 // pred_fallthru
      _
    // Predicated region
    $region30: #{tpu_custom_call.1} parent=1 // pred_check
      _
    $region31: #{tpu_custom_call.1} parent=1 // pred_check_branch
      %95 = sbr.rel (0) target = $region33
    $region32: #{tpu_custom_call.1} parent=1 // pred_region
      %97 = dma.done [#allocation5], 128
    $region33: #{tpu_custom_call.1} parent=1 // pred_fallthru
      _
    %98 = vsyncpa [#allocation4], 1
    %99 = vsyncpa [#allocation7], 1
    %100 = vsyncpa [#allocation5], 1

</llo_original>
